<compile_context>
chip_gen: v6e
topology: v6e:2x2x1
jax: 0.10.0
libtpu: 0.0.40
codegen_flags: <defaults>
</compile_context>

<pallas_src>
import jax
import jax.numpy as jnp
from jax.experimental import pallas as pl
from jax.experimental.pallas import tpu as pltpu


def _round_up(x, m):
    return (x + m - 1) // m * m


def _identity_copy_kernel(x_ref, o_ref):
    # Pure copy: one vld + one unmasked vst per vreg; strictly HBM-bound.
    o_ref[...] = x_ref[...]


def pallas_identity(x, *, block_rows=2048):
    """Identity (y = x) as a tiled Pallas TPU copy kernel.

    Works for any input shape/dtype that flattens cleanly to 32-bit words;
    the demo below uses float32.  The flattened array is padded to a
    (rows, 128) lane-dense slab, rows padded to a multiple of the block.
    """
    orig_shape = x.shape
    flat = x.reshape(-1)
    n = flat.shape[0]

    LANES = 128
    SUBLANES = 8
    rows = _round_up(pl.cdiv(n, LANES), SUBLANES)
    tm = min(block_rows, rows)              # whole slab in one block if small
    rows_p = _round_up(rows, tm)

    flat_p = jnp.pad(flat, (0, rows_p * LANES - n))
    x2d = flat_p.reshape(rows_p, LANES)

    out = pl.pallas_call(
        _identity_copy_kernel,
        out_shape=jax.ShapeDtypeStruct((rows_p, LANES), x2d.dtype),
        grid_spec=pltpu.PrefetchScalarGridSpec(
            num_scalar_prefetch=0,
            grid=(rows_p // tm,),
            in_specs=[pl.BlockSpec((tm, LANES), lambda i: (i, 0))],
            out_specs=pl.BlockSpec((tm, LANES), lambda i: (i, 0)),
        ),
        compiler_params=pltpu.CompilerParams(
            dimension_semantics=("parallel",),
            vmem_limit_bytes=16 * 1024 * 1024,   # safe on v5e/v6e/v7x
        ),
        # Output is byte-identical to the (padded) input; let XLA reuse the
        # buffer instead of allocating a second HBM slab.
        input_output_aliases={0: 0},
    )(x2d)

    return out.reshape(-1)[:n].reshape(orig_shape)


if __name__ == "__main__":
    key = jax.random.PRNGKey(0)
    # `Identity(n_inputs)` puts no constraint on the input shape; use a small
    # NCHW-style tensor consistent with how such adapters are typically used.
    x = jax.random.normal(key, (2, 4, 16, 16), jnp.float32)

    fwd = jax.jit(pallas_identity)
    y = jax.block_until_ready(fwd(x))

    assert y.shape == x.shape and y.dtype == x.dtype, (y.shape, y.dtype)
    assert bool(jnp.all(y == x))
    print("KERNEL_OK")
</pallas_src>

<mosaic_0001>
module attributes {stable_mosaic.version = 11 : i64} {
  func.func @_identity_copy_kernel(%arg0: i32, %arg1: memref<16x128xf32, #tpu.memory_space<vmem>>, %arg2: memref<16x128xf32, #tpu.memory_space<vmem>>) attributes {dimension_semantics = [#tpu.dimension_semantics<parallel>], iteration_bounds = array<i64: 1>, scalar_prefetch = 0 : i64, scratch_operands = 0 : i64, tpu.core_type = #tpu.core_type<tc>, window_params = [{transform_indices = @transform_0, window_bounds = array<i64: 16, 128>}, {transform_indices = @transform_1, window_bounds = array<i64: 16, 128>}]} {
    %c0 = arith.constant 0 : index
    %c0_0 = arith.constant 0 : index
    %0 = vector.load %arg1[%c0, %c0_0] : memref<16x128xf32, #tpu.memory_space<vmem>>, vector<16x128xf32>
    %c0_1 = arith.constant 0 : index
    %c0_2 = arith.constant 0 : index
    %1 = vector.load %arg2[%c0_1, %c0_2] : memref<16x128xf32, #tpu.memory_space<vmem>>, vector<16x128xf32>
    tpu.vector_store %arg2[%c0_1, %c0_2], %0 {strides = array<i32>} : memref<16x128xf32, #tpu.memory_space<vmem>>, vector<16x128xf32>,
    return
  }
  func.func @transform_0(%arg0: i32) -> (i32, i32) {
    %c0_i32 = arith.constant 0 : i32
    %c0_i32_0 = arith.constant 0 : i32
    return %arg0, %c0_i32 : i32, i32
  }
  func.func @transform_1(%arg0: i32) -> (i32, i32) {
    %c0_i32 = arith.constant 0 : i32
    %c0_i32_0 = arith.constant 0 : i32
    return %arg0, %c0_i32 : i32, i32
  }
}

</mosaic_0001>

<llo_original>
// kernel: pallas_identity.1
$region0: #{pallas_identity.1}
  #allocation0 [shape = 'u32[]', space=smem, size = 0x4, offset = 0x4, fixed_abs, tag = 'smem constant byte address 0x4 - core index']
  #allocation1 [shape = 'u32[144,128]{1,0:T(1,128)}', space=vmem, size = 0x12000, scoped, tag = 'internal scratch']
  %s0 = inlined_call_operand.vmem [shape: f32[16,128], index: 0, kind: input, shape index: {}, may-alias: {0,1}]
  %s1 = inlined_call_operand.vmem [shape: f32[16,128], index: 1, kind: output, shape index: {}, may-alias: {0,1}]
  %s2 = sld [smem:[#allocation0]]
  $region14: #{pallas_identity.1} parent=0
    _
  %s4 = ssub.s32 1, %s2
  %s5 = scalar_select 0, %s4, %s2
  // Predicated region
  $region2: #{pallas_identity.1} parent=0 // pred_check
    _
  $region3: #{pallas_identity.1} parent=0 // pred_check_branch
    %7 = sbr.rel (0) target = $region5
  $region4: #{pallas_identity.1} parent=0 // pred_region
    _
  $region5: #{pallas_identity.1} parent=0 // pred_fallthru
    _
  %v8 = vld [vmem:[%s0] sm:$0xff]
  %v9 = vld [vmem:[%s0 + $0x8] sm:$0xff]
  %10 = vst [vmem:[%s1] sm:$0xff] %v8
  %11 = vst [vmem:[%s1 + $0x8] sm:$0xff] %v9
  // Predicated region
  $region6: #{pallas_identity.1} parent=0 // pred_check
    _
  $region7: #{pallas_identity.1} parent=0 // pred_check_branch
    %13 = sbr.rel (0) target = $region9
  $region8: #{pallas_identity.1} parent=0 // pred_region
    _
  $region9: #{pallas_identity.1} parent=0 // pred_fallthru
    _
  // Predicated region
  $region10: #{pallas_identity.1} parent=0 // pred_check
    _
  $region11: #{pallas_identity.1} parent=0 // pred_check_branch
    %15 = sbr.rel (0) target = $region13
  $region12: #{pallas_identity.1} parent=0 // pred_region
    _
  $region13: #{pallas_identity.1} parent=0 // pred_fallthru
    _

</llo_original>
